<compile_context>
chip_gen: v7x
topology: tpu7x:2x2x1
jax: 0.10.0
libtpu: 0.0.40
codegen_flags: <defaults>
</compile_context>

<pallas_src>
import jax
import jax.numpy as jnp
from jax.experimental import pallas as pl
from jax.experimental.pallas import tpu as pltpu

EPS = 1e-5  # nn.BatchNorm2d default eps


# ---------------------------------------------------------------------------
# Pass 1: conv (transposed im2col matmul on MXU) + per-channel sum / sum-of-sq.
#   p_ref    : (K, tile_r)      bf16   im2col patch columns for this R tile
#   w_ref    : (Cout, K)        bf16   conv weights (resident, constant index)
#   conv_ref : (Cout, tile_r)   f32    conv output tile (lane-dense store)
#   s1_ref   : (Cout, 1)        f32    running per-channel sum      (resident)
#   s2_ref   : (Cout, 1)        f32    running per-channel sum(x^2) (resident)
# ---------------------------------------------------------------------------
def conv_stats_kernel(p_ref, w_ref, conv_ref, s1_ref, s2_ref):
    @pl.when(pl.program_id(0) == 0)
    def _():
        s1_ref[...] = jnp.zeros_like(s1_ref)
        s2_ref[...] = jnp.zeros_like(s2_ref)

    # (Cout, K) @ (K, tile_r) -> (Cout, tile_r); bf16 operands, f32 accumulate.
    acc = jnp.dot(w_ref[...], p_ref[...], preferred_element_type=jnp.float32)
    conv_ref[...] = acc

    # One-pass batch statistics (f32), accumulated across R tiles.
    s1_ref[...] += jnp.sum(acc, axis=1, keepdims=True)
    s2_ref[...] += jnp.sum(acc * acc, axis=1, keepdims=True)


# ---------------------------------------------------------------------------
# Pass 2: fused BN affine (precomputed per-channel scale/shift) + ReLU.
#   x_ref (Cout, tile_r) f32, scale/shift (Cout, 1) f32 -> o_ref (Cout, tile_r)
# ---------------------------------------------------------------------------
def bn_relu_kernel(x_ref, scale_ref, shift_ref, o_ref):
    o_ref[...] = jnp.maximum(x_ref[...] * scale_ref[...] + shift_ref[...], 0.0)


def _pick_tile_r(r):
    """Largest tile in {2048,...,128} not exceeding R rounded up to 128."""
    r128 = ((r + 127) // 128) * 128
    for t in (2048, 1024, 512, 256, 128):
        if t <= r128:
            return t
    return 128


def cbr_forward(x_nchw, weight, bias, gamma, beta, *, tile_r=None):
    """x_nchw: (N, Cin, H, W); weight: (Cout, Cin, 3, 3); bias/gamma/beta: (Cout,).

    Returns (N, Cout, H, W) float32, matching the PyTorch CBR forward
    (Conv2d k=3 pad=1 -> BatchNorm2d with batch statistics -> ReLU).
    The conv bias is not used in the compute path: training-mode BN subtracts
    the per-channel mean immediately after the conv, cancelling it exactly.
    """
    del bias  # cancelled exactly by the BN mean subtraction
    N, Cin, H, W = x_nchw.shape
    Cout = weight.shape[0]
    K = 9 * Cin
    R = N * H * W

    if tile_r is None:
        tile_r = _pick_tile_r(R)
    r_pad = ((R + tile_r - 1) // tile_r) * tile_r
    n_tiles = r_pad // tile_r

    # ---- wrapper glue: transposed im2col in bf16 ---------------------------
    # pmat_t[(kh*3+kw)*Cin + cin, n*H*W + h*W + w] = xpad[n, cin, h+kh, w+kw]
    x = x_nchw.astype(jnp.float32)
    xpad = jnp.pad(x, ((0, 0), (0, 0), (1, 1), (1, 1)))
    slabs = []
    for kh in range(3):
        for kw in range(3):
            s = xpad[:, :, kh:kh + H, kw:kw + W]                  # (N, Cin, H, W)
            slabs.append(jnp.transpose(s, (1, 0, 2, 3)).reshape(Cin, R))
    pmat_t = jnp.concatenate(slabs, axis=0).astype(jnp.bfloat16)  # (K, R)
    if r_pad > R:
        # zero columns: contribute 0 to the conv (no bias) and 0 to the sums.
        pmat_t = jnp.pad(pmat_t, ((0, 0), (0, r_pad - R)))

    # (Cout, Cin, 3, 3) -> (Cout, 3, 3, Cin) -> (Cout, K), matching pmat_t's K order.
    wmat = jnp.transpose(weight, (0, 2, 3, 1)).reshape(Cout, K).astype(jnp.bfloat16)

    # ---- pass 1: conv + per-channel sum / sumsq ----------------------------
    conv_t, s1, s2 = pl.pallas_call(
        conv_stats_kernel,
        out_shape=(
            jax.ShapeDtypeStruct((Cout, r_pad), jnp.float32),
            jax.ShapeDtypeStruct((Cout, 1), jnp.float32),
            jax.ShapeDtypeStruct((Cout, 1), jnp.float32),
        ),
        grid=(n_tiles,),
        in_specs=[
            pl.BlockSpec((K, tile_r), lambda i: (0, i)),
            pl.BlockSpec((Cout, K), lambda i: (0, 0)),
        ],
        out_specs=(
            pl.BlockSpec((Cout, tile_r), lambda i: (0, i)),
            pl.BlockSpec((Cout, 1), lambda i: (0, 0)),
            pl.BlockSpec((Cout, 1), lambda i: (0, 0)),
        ),
        compiler_params=pltpu.CompilerParams(dimension_semantics=("arbitrary",)),
    )(pmat_t, wmat)

    # ---- tiny per-channel stats -> fused scale/shift (plain JAX, O(Cout)) --
    count = jnp.float32(R)
    mean = s1 / count
    var = jnp.maximum(s2 / count - mean * mean, 0.0)  # biased var (BN normalization)
    scale = gamma.reshape(Cout, 1).astype(jnp.float32) * jax.lax.rsqrt(var + EPS)
    shift = beta.reshape(Cout, 1).astype(jnp.float32) - mean * scale

    # ---- pass 2: y = max(conv * scale + shift, 0) --------------------------
    out_t = pl.pallas_call(
        bn_relu_kernel,
        out_shape=jax.ShapeDtypeStruct((Cout, r_pad), jnp.float32),
        grid=(n_tiles,),
        in_specs=[
            pl.BlockSpec((Cout, tile_r), lambda i: (0, i)),
            pl.BlockSpec((Cout, 1), lambda i: (0, 0)),
            pl.BlockSpec((Cout, 1), lambda i: (0, 0)),
        ],
        out_specs=pl.BlockSpec((Cout, tile_r), lambda i: (0, i)),
        compiler_params=pltpu.CompilerParams(dimension_semantics=("parallel",)),
    )(conv_t, scale, shift)

    # (Cout, R) -> (Cout, N, H, W) -> (N, Cout, H, W)
    out = out_t[:, :R].reshape(Cout, N, H, W)
    return jnp.transpose(out, (1, 0, 2, 3))


if __name__ == "__main__":
    key = jax.random.PRNGKey(0)
    k1, k2, k3 = jax.random.split(key, 3)

    # Small shapes consistent with the module: batch=2, in_channels=4, 16x16 spatial.
    N, Cin, H, W = 2, 4, 16, 16
    Cout = 8

    x = jax.random.normal(k1, (N, Cin, H, W), jnp.float32)

    fan_in = Cin * 3 * 3
    bound = 1.0 / (fan_in ** 0.5)
    weight = jax.random.uniform(k2, (Cout, Cin, 3, 3), jnp.float32, -bound, bound)
    bias = jax.random.uniform(k3, (Cout,), jnp.float32, -bound, bound)
    gamma = jnp.ones((Cout,), jnp.float32)
    beta = jnp.zeros((Cout,), jnp.float32)

    # Auto tile (512 here) and a small tile that forces the multi-tile
    # cross-tile BN reduction path (4 grid steps) at this toy size.
    out_auto = jax.block_until_ready(cbr_forward(x, weight, bias, gamma, beta))
    out_tiled = jax.block_until_ready(
        cbr_forward(x, weight, bias, gamma, beta, tile_r=128))

    # Reference: model the kernel's bf16 MXU operands (f32 accumulate),
    # training-mode BatchNorm (biased var), ReLU.  Conv bias omitted: it is
    # cancelled exactly by the BN mean subtraction.
    xb = x.astype(jnp.bfloat16).astype(jnp.float32)
    wb = weight.astype(jnp.bfloat16).astype(jnp.float32)
    conv = jax.lax.conv_general_dilated(
        xb, wb, window_strides=(1, 1), padding=((1, 1), (1, 1)),
        dimension_numbers=("NCHW", "OIHW", "NCHW"))
    mean = conv.mean(axis=(0, 2, 3), keepdims=True)
    var = jnp.var(conv, axis=(0, 2, 3), keepdims=True)
    ref = jnp.maximum(
        (conv - mean) * jax.lax.rsqrt(var + EPS) * gamma[None, :, None, None]
        + beta[None, :, None, None], 0.0)

    assert out_auto.shape == (N, Cout, H, W)
    assert jnp.allclose(out_auto, ref, atol=1e-3, rtol=1e-3), float(
        jnp.max(jnp.abs(out_auto - ref)))
    assert jnp.allclose(out_tiled, ref, atol=1e-3, rtol=1e-3), float(
        jnp.max(jnp.abs(out_tiled - ref)))

    print("KERNEL_OK")
</pallas_src>

<mosaic_0001>
module attributes {stable_mosaic.version = 11 : i64} {
  func.func @conv_stats_kernel(%arg0: i32, %arg1: memref<36x512xbf16, #tpu.memory_space<vmem>>, %arg2: memref<8x36xbf16, #tpu.memory_space<vmem>>, %arg3: memref<8x512xf32, #tpu.memory_space<vmem>>, %arg4: memref<8x1xf32, #tpu.memory_space<vmem>>, %arg5: memref<8x1xf32, #tpu.memory_space<vmem>>) attributes {dimension_semantics = [#tpu.dimension_semantics<arbitrary>], iteration_bounds = array<i64: 1>, scalar_prefetch = 0 : i64, scratch_operands = 0 : i64, tpu.core_type = #tpu.core_type<tc>, window_params = [{transform_indices = @transform_0, window_bounds = array<i64: 36, 512>}, {pipeline_mode = #tpu.pipeline_mode<synchronous>, transform_indices = @transform_1, window_bounds = array<i64: 8, 36>}, {transform_indices = @transform_2, window_bounds = array<i64: 8, 512>}, {pipeline_mode = #tpu.pipeline_mode<synchronous>, transform_indices = @transform_3, window_bounds = array<i64: 8, 1>}, {pipeline_mode = #tpu.pipeline_mode<synchronous>, transform_indices = @transform_4, window_bounds = array<i64: 8, 1>}]} {
    %c0_i32 = arith.constant 0 : i32
    %0 = arith.cmpi eq, %arg0, %c0_i32 : i32
    %1 = arith.extui %0 : i1 to i32
    %c0_i32_0 = arith.constant 0 : i32
    %2 = arith.cmpi ne, %1, %c0_i32_0 : i32
    scf.if %2 {
      %cst_16 = arith.constant 0.000000e+00 : f32
      %18 = vector.broadcast %cst_16 : f32 to vector<8x1xf32>
      %c0_17 = arith.constant 0 : index
      %c0_18 = arith.constant 0 : index
      %19 = vector.load %arg4[%c0_17, %c0_18] : memref<8x1xf32, #tpu.memory_space<vmem>>, vector<8x1xf32>
      tpu.vector_store %arg4[%c0_17, %c0_18], %18 {strides = array<i32>} : memref<8x1xf32, #tpu.memory_space<vmem>>, vector<8x1xf32>,
      %cst_19 = arith.constant 0.000000e+00 : f32
      %20 = vector.broadcast %cst_19 : f32 to vector<8x1xf32>
      %c0_20 = arith.constant 0 : index
      %c0_21 = arith.constant 0 : index
      %21 = vector.load %arg5[%c0_20, %c0_21] : memref<8x1xf32, #tpu.memory_space<vmem>>, vector<8x1xf32>
      tpu.vector_store %arg5[%c0_20, %c0_21], %20 {strides = array<i32>} : memref<8x1xf32, #tpu.memory_space<vmem>>, vector<8x1xf32>,
    } else {
    }
    %c0 = arith.constant 0 : index
    %c0_1 = arith.constant 0 : index
    %3 = vector.load %arg2[%c0, %c0_1] : memref<8x36xbf16, #tpu.memory_space<vmem>>, vector<8x36xbf16>
    %c0_2 = arith.constant 0 : index
    %c0_3 = arith.constant 0 : index
    %4 = vector.load %arg1[%c0_2, %c0_3] : memref<36x512xbf16, #tpu.memory_space<vmem>>, vector<36x512xbf16>
    %cst = arith.constant dense<0.000000e+00> : vector<8x512xf32>
    %5 = tpu.matmul %3, %4, %cst {dimension_numbers = #tpu.dot_dimension_numbers<[1], [0], [0], [1], [0, 0, 1, 1], [], []>} : vector<8x36xbf16>, vector<36x512xbf16>, vector<8x512xf32> -> vector<8x512xf32>
    %c0_4 = arith.constant 0 : index
    %c0_5 = arith.constant 0 : index
    %6 = vector.load %arg3[%c0_4, %c0_5] : memref<8x512xf32, #tpu.memory_space<vmem>>, vector<8x512xf32>
    tpu.vector_store %arg3[%c0_4, %c0_5], %5 {strides = array<i32>} : memref<8x512xf32, #tpu.memory_space<vmem>>, vector<8x512xf32>,
    %c0_6 = arith.constant 0 : index
    %c0_7 = arith.constant 0 : index
    %7 = vector.load %arg4[%c0_6, %c0_7] : memref<8x1xf32, #tpu.memory_space<vmem>>, vector<8x1xf32>
    %cst_8 = arith.constant dense<0.000000e+00> : vector<8xf32>
    %8 = vector.multi_reduction <add>, %5, %cst_8 [1] : vector<8x512xf32> to vector<8xf32>
    %9 = vector.shape_cast %8 : vector<8xf32> to vector<8x1xf32>
    %10 = arith.addf %7, %9 : vector<8x1xf32>
    %c0_9 = arith.constant 0 : index
    %c0_10 = arith.constant 0 : index
    %11 = vector.load %arg4[%c0_9, %c0_10] : memref<8x1xf32, #tpu.memory_space<vmem>>, vector<8x1xf32>
    tpu.vector_store %arg4[%c0_9, %c0_10], %10 {strides = array<i32>} : memref<8x1xf32, #tpu.memory_space<vmem>>, vector<8x1xf32>,
    %c0_11 = arith.constant 0 : index
    %c0_12 = arith.constant 0 : index
    %12 = vector.load %arg5[%c0_11, %c0_12] : memref<8x1xf32, #tpu.memory_space<vmem>>, vector<8x1xf32>
    %13 = arith.mulf %5, %5 : vector<8x512xf32>
    %cst_13 = arith.constant dense<0.000000e+00> : vector<8xf32>
    %14 = vector.multi_reduction <add>, %13, %cst_13 [1] : vector<8x512xf32> to vector<8xf32>
    %15 = vector.shape_cast %14 : vector<8xf32> to vector<8x1xf32>
    %16 = arith.addf %12, %15 : vector<8x1xf32>
    %c0_14 = arith.constant 0 : index
    %c0_15 = arith.constant 0 : index
    %17 = vector.load %arg5[%c0_14, %c0_15] : memref<8x1xf32, #tpu.memory_space<vmem>>, vector<8x1xf32>
    tpu.vector_store %arg5[%c0_14, %c0_15], %16 {strides = array<i32>} : memref<8x1xf32, #tpu.memory_space<vmem>>, vector<8x1xf32>,
    return
  }
  func.func @transform_0(%arg0: i32) -> (i32, i32) {
    %c0_i32 = arith.constant 0 : i32
    %c0_i32_0 = arith.constant 0 : i32
    return %c0_i32, %arg0 : i32, i32
  }
  func.func @transform_1(%arg0: i32) -> (i32, i32) {
    %c0_i32 = arith.constant 0 : i32
    %c0_i32_0 = arith.constant 0 : i32
    %c0_i32_1 = arith.constant 0 : i32
    return %c0_i32, %c0_i32_0 : i32, i32
  }
  func.func @transform_2(%arg0: i32) -> (i32, i32) {
    %c0_i32 = arith.constant 0 : i32
    %c0_i32_0 = arith.constant 0 : i32
    return %c0_i32, %arg0 : i32, i32
  }
  func.func @transform_3(%arg0: i32) -> (i32, i32) {
    %c0_i32 = arith.constant 0 : i32
    %c0_i32_0 = arith.constant 0 : i32
    %c0_i32_1 = arith.constant 0 : i32
    return %c0_i32, %c0_i32_0 : i32, i32
  }
  func.func @transform_4(%arg0: i32) -> (i32, i32) {
    %c0_i32 = arith.constant 0 : i32
    %c0_i32_0 = arith.constant 0 : i32
    %c0_i32_1 = arith.constant 0 : i32
    return %c0_i32, %c0_i32_0 : i32, i32
  }
}

</mosaic_0001>

<llo_original>
// kernel: tpu_custom_call.1
$region0: #{tpu_custom_call.1}
  #allocation0 [shape = 'u32[]', space=smem, size = 0x4, offset = 0x4, fixed_abs, tag = 'smem constant byte address 0x4 - core index']
  #allocation1 [shape = 'u32[144,128]{1,0:T(1,128)}', space=vmem, size = 0x12000, scoped, tag = 'internal scratch']
  %s0 = inlined_call_operand.hbm [shape: bf16[36,512], index: 0, kind: input, shape index: {}]
  %s1 = inlined_call_operand.hbm [shape: bf16[8,36], index: 1, kind: input, shape index: {}]
  %s2 = inlined_call_operand.hbm [shape: f32[8,512], index: 2, kind: output, shape index: {0}]
  %s3 = inlined_call_operand.vmem [shape: f32[8,1], index: 3, kind: output, shape index: {1}]
  %s4 = inlined_call_operand.vmem [shape: f32[8,1], index: 4, kind: output, shape index: {2}]
  %5 = xla_tuple %s2, %s3, %s4
  %s6 = sld [smem:[#allocation0]]
  $region46: #{tpu_custom_call.1} parent=0
    _
  %s8 = ssub.s32 1, %s6
  %s9 = scalar_select 0, %s8, %s6
  $region1: #{tpu_custom_call.1} parent=0
    #allocation2 [shape = 'u8[40960]{0}', space=vmem, size = 0xa000, scoped, tag = 'input window, operand 0, single buffered']
    #allocation3 [shape = 's32[1]{0}', space=sflag, size = 0x4, scoped, tag = 'scoped memory for tpu_custom_call.1']
    #allocation4 [shape = 's32[1]{0}', space=sflag, size = 0x4, scoped, tag = 'scoped memory for tpu_custom_call.1']
    #allocation5 [shape = 'u8[2048]{0}', space=vmem, size = 0x800, scoped, tag = 'input window, operand 1, single buffered']
    #allocation6 [shape = 's32[1]{0}', space=sflag, size = 0x4, scoped, tag = 'scoped memory for tpu_custom_call.1']
    #allocation7 [shape = 'u8[16384]{0}', space=vmem, size = 0x4000, scoped, tag = 'output window, operand 0, single buffered']
    %10 = vsyncpa [#allocation3], 0
    %11 = vsyncpa [#allocation6], 0
    %12 = vsyncpa [#allocation4], 0
    // Predicated region
    $region2: #{tpu_custom_call.1} parent=1 // pred_check
      _
    $region3: #{tpu_custom_call.1} parent=1 // pred_check_branch
      %14 = sbr.rel (0) target = $region5
    $region4: #{tpu_custom_call.1} parent=1 // pred_region
      %s16 = ssub.s32 1280, 1280
      %17 = vsyncadd [#allocation3], %s16
      %s18 = sshll.u32 [#allocation2], 4
      %s19 = int_to_ptr.vmem [resolvable:$true] %s18
      %24 = dma.hbm_to_vmem [thread:$0]  %s0, 1280, %s19, [#allocation3], 256, 256, 16
    $region5: #{tpu_custom_call.1} parent=1 // pred_fallthru
      _
    // Predicated region
    $region6: #{tpu_custom_call.1} parent=1 // pred_check
      _
    $region7: #{tpu_custom_call.1} parent=1 // pred_check_branch
      %26 = sbr.rel (0) target = $region9
    $region8: #{tpu_custom_call.1} parent=1 // pred_region
      %s28 = ssub.s32 64, 64
      %29 = vsyncadd [#allocation6], %s28
      %s31 = sshll.u32 [#allocation5], 4
      %s32 = int_to_ptr.vmem [resolvable:$true] %s31
      %34 = dma.hbm_to_vmem [thread:$0]  %s1, 64, %s32, [#allocation6]
    $region9: #{tpu_custom_call.1} parent=1 // pred_fallthru
      _
    // Predicated region
    $region10: #{tpu_custom_call.1} parent=1 // pred_check
      _
    $region11: #{tpu_custom_call.1} parent=1 // pred_check_branch
      %36 = sbr.rel (0) target = $region13
    $region12: #{tpu_custom_call.1} parent=1 // pred_region
      %37 = dma.done [#allocation3], 1280
    $region13: #{tpu_custom_call.1} parent=1 // pred_fallthru
      _
    // Predicated region
    $region14: #{tpu_custom_call.1} parent=1 // pred_check
      _
    $region15: #{tpu_custom_call.1} parent=1 // pred_check_branch
      %39 = sbr.rel (0) target = $region17
    $region16: #{tpu_custom_call.1} parent=1 // pred_region
      %40 = dma.done [#allocation6], 64
    $region17: #{tpu_custom_call.1} parent=1 // pred_fallthru
      _
    %p42 = scmp.eq.s32.totalorder 0, 0
    // Predicated region
    $region18: #{tpu_custom_call.1} parent=1 // pred_check
      %p43 = pneg %p42
    $region19: #{tpu_custom_call.1} parent=1 // pred_check_branch
      %45 = sbr.rel (%p43) target = $region21
    $region20: #{tpu_custom_call.1} parent=1 // pred_region
      %vm46 = vcmask 7168
      %47 = vst.msk [vmem:[%s3] sm:$0xff] %vm46, 0.0
      %48 = vst.msk [vmem:[%s4] sm:$0xff] %vm46, 0.0
    $region21: #{tpu_custom_call.1} parent=1 // pred_fallthru
      _
    %v49 = vld [vmem:[#allocation5] sm:$0xf]
    %v50 = vld [vmem:[#allocation2] sm:$0xff]
    %v51 = vld [vmem:[#allocation2 + $0x8] sm:$0xff]
    %v52 = vld [vmem:[#allocation2 + $0x10] sm:$0xff]
    %v53 = vld [vmem:[#allocation2 + $0x18] sm:$0xff]
    %v54 = vld [vmem:[#allocation2 + $0x20] sm:$0xff]
    %v55 = vld [vmem:[#allocation2 + $0x28] sm:$0xff]
    %v56 = vld [vmem:[#allocation2 + $0x30] sm:$0xff]
    %v57 = vld [vmem:[#allocation2 + $0x38] sm:$0xff]
    %v58 = vld [vmem:[#allocation2 + $0x40] sm:$0x33]
    %v59 = vld [vmem:[#allocation2 + $0x48] sm:$0x33]
    %v70 = vunpack.c.l.b16 %v50
    %v71 = vunpack.c.h.b16 %v50
    %v72 = vunpack.c.l.b16 %v51
    %v73 = vunpack.c.h.b16 %v51
    %v74 = vunpack.c.l.b16 %v52
    %v75 = vunpack.c.h.b16 %v52
    %v76 = vunpack.c.l.b16 %v53
    %v77 = vunpack.c.h.b16 %v53
    %v78 = vunpack.c.l.b16 %v54
    %v79 = vunpack.c.h.b16 %v54
    %v80 = vunpack.c.l.b16 %v55
    %v81 = vunpack.c.h.b16 %v55
    %v82 = vunpack.c.l.b16 %v56
    %v83 = vunpack.c.h.b16 %v56
    %v84 = vunpack.c.l.b16 %v57
    %v85 = vunpack.c.h.b16 %v57
    %v86 = vunpack.c.l.b16 %v58
    %v87 = vunpack.c.h.b16 %v58
    %v88 = vunpack.c.l.b16 %v59
    %v89 = vunpack.c.h.b16 %v59
    %v90 = vpack.c.b16 %v74, %v70
    %v91 = vpack.c.b16 %v75, %v71
    %v92 = vpack.c.b16 %v76, %v72
    %v93 = vpack.c.b16 %v77, %v73
    %v94 = vpack.c.b16 %v82, %v78
    %v95 = vpack.c.b16 %v83, %v79
    %v96 = vpack.c.b16 %v84, %v80
    %v97 = vpack.c.b16 %v85, %v81
    %v98 = vpack.c.b16 %v86, %v86
    %v99 = vpack.c.b16 %v87, %v87
    %v100 = vpack.c.b16 %v88, %v88
    %v101 = vpack.c.b16 %v89, %v89
    %vm110 = vcmask 293888
    %v112 = vsel %vm110, %v49, 0
    %vm114 = vcmask 1041408
    %v116 = vsel %vm114, %v98, 0
    %v119 = vsel %vm114, %v99, 0
    %v122 = vsel %vm114, %v100, 0
    %v125 = vsel %vm114, %v101, 0
    %127 = vmatprep.subr.bf16.mxu0 %v91
    %128 = vmatpush1.bf16.msra.mxu0 %v90
    %129 = vmatprep.subr.bf16.mxu0 %v95
    %130 = vmatpush1.bf16.msra.mxu0 %v94
    %131 = vmatprep.subr.bf16.mxu0 %v119
    %132 = vmatpush1.bf16.msra.mxu0 %v116
    %133 = vmatprep.subr.bf16.mxu0 0
    %134 = vmatpush1.bf16.msra.mxu0 0
    %135 = vmatprep.subr.bf16.mxu0 0
    %136 = vmatpush1.bf16.msra.mxu0 0
    %137 = vmatprep.subr.bf16.mxu0 0
    %138 = vmatpush1.bf16.msra.mxu0 0
    %139 = vmatprep.subr.bf16.mxu0 0
    %140 = vmatpush1.bf16.msra.mxu0 0
    %141 = vmatprep.subr.bf16.mxu0 0
    %142 = vmatpush1.bf16.msra.mxu0 0
    %143 = vmatprep.subr.bf16.mxu0 0
    %144 = vmatpush1.bf16.msra.mxu0 0
    %145 = vmatprep.subr.bf16.mxu0 0
    %146 = vmatpush1.bf16.msra.mxu0 0
    %147 = vmatprep.subr.bf16.mxu0 0
    %148 = vmatpush1.bf16.msra.mxu0 0
    %149 = vmatprep.subr.bf16.mxu0 0
    %150 = vmatpush1.bf16.msra.mxu0 0
    %151 = vmatprep.subr.bf16.mxu0 0
    %152 = vmatpush1.bf16.msra.mxu0 0
    %153 = vmatprep.subr.bf16.mxu0 0
    %154 = vmatpush1.bf16.msra.mxu0 0
    %155 = vmatprep.subr.bf16.mxu0 0
    %156 = vmatpush1.bf16.msra.mxu0 0
    %157 = vmatprep.subr.bf16.mxu0 0
    %158 = vmatpush1.bf16.msra.mxu0 0
    %159 = vmatprep.mubr.bf16.mxu0 0
    %160 = vmatmul.mubr.bf16.gmra.mrb[0].mxu0 %v112
    %v161 = vpop.f32.mrb[0].mxu0
    %v162 = vadd.f32 0.0, %v161
    %v163 = vpop.f32.mrb[0].mxu0
    %v164 = vadd.f32 0.0, %v163
    %v165 = vpop.f32.mrb[0].mxu0
    %v166 = vpop.f32.mrb[0].mxu0
    %167 = vdwg.mxu0
    %168 = vmatprep.subr.bf16.mxu0 %v93
    %169 = vmatpush1.bf16.msra.mxu0 %v92
    %170 = vmatprep.subr.bf16.mxu0 %v97
    %171 = vmatpush1.bf16.msra.mxu0 %v96
    %172 = vmatprep.subr.bf16.mxu0 %v125
    %173 = vmatpush1.bf16.msra.mxu0 %v122
    %174 = vmatprep.subr.bf16.mxu0 0
    %175 = vmatpush1.bf16.msra.mxu0 0
    %176 = vmatprep.subr.bf16.mxu0 0
    %177 = vmatpush1.bf16.msra.mxu0 0
    %178 = vmatprep.subr.bf16.mxu0 0
    %179 = vmatpush1.bf16.msra.mxu0 0
    %180 = vmatprep.subr.bf16.mxu0 0
    %181 = vmatpush1.bf16.msra.mxu0 0
    %182 = vmatprep.subr.bf16.mxu0 0
    %183 = vmatpush1.bf16.msra.mxu0 0
    %184 = vmatprep.subr.bf16.mxu0 0
    %185 = vmatpush1.bf16.msra.mxu0 0
    %186 = vmatprep.subr.bf16.mxu0 0
    %187 = vmatpush1.bf16.msra.mxu0 0
    %188 = vmatprep.subr.bf16.mxu0 0
    %189 = vmatpush1.bf16.msra.mxu0 0
    %190 = vmatprep.subr.bf16.mxu0 0
    %191 = vmatpush1.bf16.msra.mxu0 0
    %192 = vmatprep.subr.bf16.mxu0 0
    %193 = vmatpush1.bf16.msra.mxu0 0
    %194 = vmatprep.subr.bf16.mxu0 0
    %195 = vmatpush1.bf16.msra.mxu0 0
    %196 = vmatprep.subr.bf16.mxu0 0
    %197 = vmatpush1.bf16.msra.mxu0 0
    %198 = vmatprep.subr.bf16.mxu0 0
    %199 = vmatpush1.bf16.msra.mxu0 0
    %200 = vmatprep.mubr.bf16.mxu0 0
    %201 = vmatmul.mubr.bf16.gmra.mrb[0].mxu0 %v112
    %v202 = vpop.f32.mrb[0].mxu0
    %v203 = vadd.f32 0.0, %v202
    %v204 = vpop.f32.mrb[0].mxu0
    %v205 = vadd.f32 0.0, %v204
    %v206 = vpop.f32.mrb[0].mxu0
    %v207 = vpop.f32.mrb[0].mxu0
    %208 = vdwg.mxu0
    %209 = vst [vmem:[#allocation7] sm:$0xff] %v162
    %210 = vst [vmem:[#allocation7 + $0x8] sm:$0xff] %v164
    %211 = vst [vmem:[#allocation7 + $0x10] sm:$0xff] %v203
    %212 = vst [vmem:[#allocation7 + $0x18] sm:$0xff] %v205
    %v213 = vld [vmem:[%s3] sm:$0xff]
    %v214 = vadd.f32 %v162, %v164
    %v215 = vadd.f32 %v214, %v203
    %v216 = vadd.f32 %v215, %v205
    %217 = vadd.xlane.f32.xlu0 %v216
    %v218 = vpop.xlane.xlu0 %217
    %v219 = vadd.f32 %v213, %v218
    %vm220 = vcmask 7168
    %221 = vst.msk [vmem:[%s3] sm:$0xff] %vm220, %v219
    %v222 = vld [vmem:[%s4] sm:$0xff]
    %v223 = vmul.f32 %v162, %v162
    %v224 = vmul.f32 %v164, %v164
    %v225 = vmul.f32 %v203, %v203
    %v226 = vmul.f32 %v205, %v205
    %v227 = vadd.f32 %v223, %v224
    %v228 = vadd.f32 %v227, %v225
    %v229 = vadd.f32 %v228, %v226
    %230 = vadd.xlane.f32.xlu0 %v229
    %v231 = vpop.xlane.xlu0 %230
    %v232 = vadd.f32 %v222, %v231
    %233 = vst.msk [vmem:[%s4] sm:$0xff] %vm220, %v232
    // Predicated region
    $region22: #{tpu_custom_call.1} parent=1 // pred_check
      _
    $region23: #{tpu_custom_call.1} parent=1 // pred_check_branch
      %235 = sbr.rel (0) target = $region25
    $region24: #{tpu_custom_call.1} parent=1 // pred_region
      %s237 = ssub.s32 512, 512
      %238 = vsyncadd [#allocation4], %s237
      %s240 = sshll.u32 [#allocation7], 4
      %s241 = int_to_ptr.vmem [resolvable:$true] %s240
      %243 = dma.vmem_to_hbm [thread:$0]  %s241, 512, %s2, [#allocation4]
    $region25: #{tpu_custom_call.1} parent=1 // pred_fallthru
      _
    // Predicated region
    $region26: #{tpu_custom_call.1} parent=1 // pred_check
      _
    $region27: #{tpu_custom_call.1} parent=1 // pred_check_branch
      %245 = sbr.rel (0) target = $region29
    $region28: #{tpu_custom_call.1} parent=1 // pred_region
      _
    $region29: #{tpu_custom_call.1} parent=1 // pred_fallthru
      _
    // Predicated region
    $region30: #{tpu_custom_call.1} parent=1 // pred_check
      _
    $region31: #{tpu_custom_call.1} parent=1 // pred_check_branch
      %247 = sbr.rel (0) target = $region33
    $region32: #{tpu_custom_call.1} parent=1 // pred_region
      _
    $region33: #{tpu_custom_call.1} parent=1 // pred_fallthru
      _
    // Predicated region
    $region34: #{tpu_custom_call.1} parent=1 // pred_check
      _
    $region35: #{tpu_custom_call.1} parent=1 // pred_check_branch
      %249 = sbr.rel (0) target = $region37
    $region36: #{tpu_custom_call.1} parent=1 // pred_region
      %250 = dma.done [#allocation4], 512
    $region37: #{tpu_custom_call.1} parent=1 // pred_fallthru
      _
    // Predicated region
    $region38: #{tpu_custom_call.1} parent=1 // pred_check
      _
    $region39: #{tpu_custom_call.1} parent=1 // pred_check_branch
      %252 = sbr.rel (0) target = $region41
    $region40: #{tpu_custom_call.1} parent=1 // pred_region
      _
    $region41: #{tpu_custom_call.1} parent=1 // pred_fallthru
      _
    // Predicated region
    $region42: #{tpu_custom_call.1} parent=1 // pred_check
      _
    $region43: #{tpu_custom_call.1} parent=1 // pred_check_branch
      %254 = sbr.rel (0) target = $region45
    $region44: #{tpu_custom_call.1} parent=1 // pred_region
      _
    $region45: #{tpu_custom_call.1} parent=1 // pred_fallthru
      _
    %255 = vsyncpa [#allocation3], 1
    %256 = vsyncpa [#allocation6], 1
    %257 = vsyncpa [#allocation4], 1

</llo_original>
